<compile_context>
chip_gen: v7x
topology: tpu7x:2x2x1
jax: 0.10.0
libtpu: 0.0.40
codegen_flags: <defaults>
</compile_context>

<pallas_src>
import jax
import jax.numpy as jnp
from jax.experimental import pallas as pl
from jax.experimental.pallas import tpu as pltpu

LANE = 128
SUBLANE = 8


def _round_up(x, m):
    return (x + m - 1) // m * m


def grum_cell_kernel(xd_ref, h_ref, w_xd_ref, w_h_ref, w_hh_ref,
                     b_zr_ref, b_h_ref, b_beta_ref, h_out_ref):
    f32 = jnp.float32
    bf16 = jnp.bfloat16
    Hp = h_ref.shape[-1]

    xd = xd_ref[...].astype(bf16)          # [X | Delta], bf16 MXU operand
    h = h_ref[...]                         # f32, used in gating math
    h_bf = h.astype(bf16)

    # One lane-dense MXU pass for all input-side projections:
    #   cols [0:Hp)=X@W_xz  [Hp:2Hp)=X@W_xr  [2Hp:3Hp)=X@W_xh  [3Hp:4Hp)=Delta@W_beta
    xw = jnp.dot(xd, w_xd_ref[...], preferred_element_type=f32)

    # beta = exp(min(0, Delta @ W_beta + b_beta))
    beta = jnp.exp(jnp.minimum(0.0, xw[:, 3 * Hp:4 * Hp] + b_beta_ref[...]))

    # One MXU pass for the H-side z/r projections: [H@W_hz | H@W_hr]
    hw = jnp.dot(h_bf, w_h_ref[...], preferred_element_type=f32)

    # Fused (B, 2*Hp) z/r gate slab -> single wide sigmoid stream on the EUP.
    beta2 = jnp.concatenate([beta, beta], axis=-1)
    zr = jax.nn.sigmoid(xw[:, :2 * Hp] * beta2 + hw + b_zr_ref[...])
    z = zr[:, :Hp]
    r = zr[:, Hp:]

    # H_tilde = tanh((X@W_xh)*beta + (R*H)@W_hh + b_h)
    h_tilde = jnp.tanh(
        xw[:, 2 * Hp:3 * Hp] * beta
        + jnp.dot((r * h).astype(bf16), w_hh_ref[...], preferred_element_type=f32)
        + b_h_ref[...])

    # H_new = Z*H + (1-Z)*H_tilde   (elementwise math in f32)
    h_out_ref[...] = z * h + (1.0 - z) * h_tilde


def init_params(key, num_inputs, num_hiddens):
    """Raw parameters with the same shapes/init as the PyTorch module."""
    def normal(k, shape):
        return jax.random.normal(k, shape, dtype=jnp.float32) * 0.01

    ks = jax.random.split(key, 7)
    return {
        "W_xz": normal(ks[0], (num_inputs, num_hiddens)),
        "W_hz": normal(ks[1], (num_hiddens, num_hiddens)),
        "b_z": jnp.zeros((num_hiddens,), jnp.float32),
        "W_xr": normal(ks[2], (num_inputs, num_hiddens)),
        "W_hr": normal(ks[3], (num_hiddens, num_hiddens)),
        "b_r": jnp.zeros((num_hiddens,), jnp.float32),
        "W_xh": normal(ks[4], (num_inputs, num_hiddens)),
        "W_hh": normal(ks[5], (num_hiddens, num_hiddens)),
        "b_h": jnp.zeros((num_hiddens,), jnp.float32),
        "W_beta": normal(ks[6], (num_inputs, num_hiddens)),
        "b_beta": jnp.zeros((num_hiddens,), jnp.float32),
    }


def prepare_params(params, num_inputs, num_hiddens):
    """Fuse + pad + bf16-cast weights once (done outside the kernel)."""
    I, H = num_inputs, num_hiddens
    Hp = _round_up(H, LANE)
    pad_h = Hp - H

    def pad_w(w):   # (I, H) -> (I, Hp)
        return jnp.pad(w, ((0, 0), (0, pad_h)))

    def pad_wh(w):  # (H, H) -> (Hp, Hp)
        return jnp.pad(w, ((0, pad_h), (0, pad_h)))

    def pad_b(b):   # (H,) -> (1, Hp)
        return jnp.pad(b, (0, pad_h)).reshape(1, Hp)

    zeros_x = jnp.zeros((I, Hp), jnp.float32)
    # Block-structured fused input-side weight, LHS is [X | Delta]:
    top = jnp.concatenate(
        [pad_w(params["W_xz"]), pad_w(params["W_xr"]), pad_w(params["W_xh"]), zeros_x],
        axis=1)
    bot = jnp.concatenate([zeros_x, zeros_x, zeros_x, pad_w(params["W_beta"])], axis=1)
    w_xd = jnp.concatenate([top, bot], axis=0).astype(jnp.bfloat16)       # (2I, 4Hp)

    w_h = jnp.concatenate([pad_wh(params["W_hz"]), pad_wh(params["W_hr"])],
                          axis=1).astype(jnp.bfloat16)                    # (Hp, 2Hp)
    w_hh = pad_wh(params["W_hh"]).astype(jnp.bfloat16)                    # (Hp, Hp)

    b_zr = jnp.concatenate([pad_b(params["b_z"]), pad_b(params["b_r"])], axis=1)
    return {
        "w_xd": w_xd, "w_h": w_h, "w_hh": w_hh,
        "b_zr": b_zr, "b_h": pad_b(params["b_h"]), "b_beta": pad_b(params["b_beta"]),
        "Hp": Hp, "I": I, "H": H,
    }


def grum_cell(x, delta, h, prep, *, block_batch=256):
    """One GRUM cell step. x/delta: (B, I) f32, h: (B, H) f32 -> (B, H) f32."""
    B = x.shape[0]
    I, H, Hp = prep["I"], prep["H"], prep["Hp"]

    # Layout plumbing (wrapper-side): fuse [X | Delta], pad batch & hidden dim.
    xd = jnp.concatenate([x, delta], axis=-1)                 # (B, 2I) f32
    tb = min(_round_up(B, SUBLANE), block_batch)              # batch tile
    Bp = _round_up(B, tb)
    xd = jnp.pad(xd, ((0, Bp - B), (0, 0)))
    h_pad = jnp.pad(h, ((0, Bp - B), (0, Hp - H)))

    grid = (Bp // tb,)

    flops = 2 * Bp * (2 * I * 4 * Hp + Hp * 2 * Hp + Hp * Hp)
    transcendentals = 4 * Bp * Hp                             # exp + 2*sigmoid + tanh
    bytes_accessed = int(
        (prep["w_xd"].size + prep["w_h"].size + prep["w_hh"].size) * 2      # bf16 weights
        + (prep["b_zr"].size + prep["b_h"].size + prep["b_beta"].size) * 4  # f32 biases
        + (xd.size + 2 * h_pad.size) * 4)                                   # f32 activations

    out = pl.pallas_call(
        grum_cell_kernel,
        out_shape=jax.ShapeDtypeStruct((Bp, Hp), jnp.float32),
        grid_spec=pltpu.PrefetchScalarGridSpec(
            num_scalar_prefetch=0,
            grid=grid,
            in_specs=[
                pl.BlockSpec((tb, 2 * I), lambda b: (b, 0)),       # [X | Delta] tile
                pl.BlockSpec((tb, Hp), lambda b: (b, 0)),          # H tile
                pl.BlockSpec((2 * I, 4 * Hp), lambda b: (0, 0)),   # fused X/Delta weights
                pl.BlockSpec((Hp, 2 * Hp), lambda b: (0, 0)),      # fused [W_hz | W_hr]
                pl.BlockSpec((Hp, Hp), lambda b: (0, 0)),          # W_hh
                pl.BlockSpec((1, 2 * Hp), lambda b: (0, 0)),       # [b_z | b_r]
                pl.BlockSpec((1, Hp), lambda b: (0, 0)),           # b_h
                pl.BlockSpec((1, Hp), lambda b: (0, 0)),           # b_beta
            ],
            out_specs=pl.BlockSpec((tb, Hp), lambda b: (b, 0)),
        ),
        compiler_params=pltpu.CompilerParams(
            dimension_semantics=("parallel",),                     # megacore on v7x
        ),
        cost_estimate=pl.CostEstimate(
            flops=flops, transcendentals=transcendentals, bytes_accessed=bytes_accessed),
        input_output_aliases={1: 0},                               # in-place H update
    )(xd, h_pad, prep["w_xd"], prep["w_h"], prep["w_hh"],
      prep["b_zr"], prep["b_h"], prep["b_beta"])

    return out[:B, :H]


def grum_cell_ref(x, delta, h, p):
    """Pure-JAX f32 reference mirroring the PyTorch forward."""
    beta = jnp.exp(jnp.minimum(0.0, delta @ p["W_beta"] + p["b_beta"]))
    z = jax.nn.sigmoid(x @ p["W_xz"] * beta + h @ p["W_hz"] + p["b_z"])
    r = jax.nn.sigmoid(x @ p["W_xr"] * beta + h @ p["W_hr"] + p["b_r"])
    h_tilde = jnp.tanh(x @ p["W_xh"] * beta + (r * h) @ p["W_hh"] + p["b_h"])
    return z * h + (1.0 - z) * h_tilde


if __name__ == "__main__":
    batch, num_inputs, num_hiddens = 8, 16, 32

    key = jax.random.PRNGKey(0)
    k_x, k_d, k_h, k_p = jax.random.split(key, 4)

    X = jax.random.normal(k_x, (batch, num_inputs), dtype=jnp.float32)
    Delta = jax.random.normal(k_d, (batch, num_inputs), dtype=jnp.float32)
    H = jax.random.normal(k_h, (batch, num_hiddens), dtype=jnp.float32)

    params = init_params(k_p, num_inputs, num_hiddens)
    prep = prepare_params(params, num_inputs, num_hiddens)

    H_new = grum_cell(X, Delta, H, prep)
    H_new = jax.block_until_ready(H_new)

    H_ref = grum_cell_ref(X, Delta, H, params)
    assert H_new.shape == (batch, num_hiddens)
    # bf16 MXU operands (f32 accumulation) -> loosened tolerance vs pure-f32 ref.
    assert jnp.allclose(H_new, H_ref, atol=1e-2, rtol=1e-2), (
        float(jnp.max(jnp.abs(H_new - H_ref))))

    print("KERNEL_OK")
</pallas_src>

<mosaic_0001>
module attributes {stable_mosaic.version = 11 : i64} {
  func.func @grum_cell_kernel(%arg0: i32, %arg1: memref<8x32xf32, #tpu.memory_space<vmem>>, %arg2: memref<8x128xf32, #tpu.memory_space<vmem>>, %arg3: memref<32x512xbf16, #tpu.memory_space<vmem>>, %arg4: memref<128x256xbf16, #tpu.memory_space<vmem>>, %arg5: memref<128x128xbf16, #tpu.memory_space<vmem>>, %arg6: memref<1x256xf32, #tpu.memory_space<vmem>>, %arg7: memref<1x128xf32, #tpu.memory_space<vmem>>, %arg8: memref<1x128xf32, #tpu.memory_space<vmem>>, %arg9: memref<8x128xf32, #tpu.memory_space<vmem>>) attributes {dimension_semantics = [#tpu.dimension_semantics<parallel>], iteration_bounds = array<i64: 1>, scalar_prefetch = 0 : i64, scratch_operands = 0 : i64, tpu.core_type = #tpu.core_type<tc>, window_params = [{transform_indices = @transform_0, window_bounds = array<i64: 8, 32>}, {transform_indices = @transform_1, window_bounds = array<i64: 8, 128>}, {pipeline_mode = #tpu.pipeline_mode<synchronous>, transform_indices = @transform_2, window_bounds = array<i64: 32, 512>}, {pipeline_mode = #tpu.pipeline_mode<synchronous>, transform_indices = @transform_3, window_bounds = array<i64: 128, 256>}, {pipeline_mode = #tpu.pipeline_mode<synchronous>, transform_indices = @transform_4, window_bounds = array<i64: 128, 128>}, {pipeline_mode = #tpu.pipeline_mode<synchronous>, transform_indices = @transform_5, window_bounds = array<i64: 1, 256>}, {pipeline_mode = #tpu.pipeline_mode<synchronous>, transform_indices = @transform_6, window_bounds = array<i64: 1, 128>}, {pipeline_mode = #tpu.pipeline_mode<synchronous>, transform_indices = @transform_7, window_bounds = array<i64: 1, 128>}, {transform_indices = @transform_8, window_bounds = array<i64: 8, 128>}]} {
    %c0 = arith.constant 0 : index
    %c0_0 = arith.constant 0 : index
    %0 = vector.load %arg1[%c0, %c0_0] : memref<8x32xf32, #tpu.memory_space<vmem>>, vector<8x32xf32>
    %1 = arith.truncf %0 : vector<8x32xf32> to vector<8x32xbf16>
    %c0_1 = arith.constant 0 : index
    %c0_2 = arith.constant 0 : index
    %2 = vector.load %arg2[%c0_1, %c0_2] : memref<8x128xf32, #tpu.memory_space<vmem>>, vector<8x128xf32>
    %3 = arith.truncf %2 : vector<8x128xf32> to vector<8x128xbf16>
    %c0_3 = arith.constant 0 : index
    %c0_4 = arith.constant 0 : index
    %4 = vector.load %arg3[%c0_3, %c0_4] : memref<32x512xbf16, #tpu.memory_space<vmem>>, vector<32x512xbf16>
    %cst = arith.constant dense<0.000000e+00> : vector<8x512xf32>
    %5 = tpu.matmul %1, %4, %cst {dimension_numbers = #tpu.dot_dimension_numbers<[1], [0], [0], [1], [0, 0, 1, 1], [], []>} : vector<8x32xbf16>, vector<32x512xbf16>, vector<8x512xf32> -> vector<8x512xf32>
    %6 = vector.extract_strided_slice %5 {offsets = [0, 384], sizes = [8, 128], strides = [1, 1]} : vector<8x512xf32> to vector<8x128xf32>
    %c0_5 = arith.constant 0 : index
    %c0_6 = arith.constant 0 : index
    %7 = vector.load %arg8[%c0_5, %c0_6] : memref<1x128xf32, #tpu.memory_space<vmem>>, vector<1x128xf32>
    %8 = vector.broadcast %7 : vector<1x128xf32> to vector<8x128xf32>
    %9 = arith.addf %6, %8 : vector<8x128xf32>
    %cst_7 = arith.constant 0.000000e+00 : f32
    %10 = vector.broadcast %cst_7 : f32 to vector<8x128xf32>
    %11 = arith.minimumf %10, %9 : vector<8x128xf32>
    %12 = math.exp %11 : vector<8x128xf32>
    %c0_8 = arith.constant 0 : index
    %c0_9 = arith.constant 0 : index
    %13 = vector.load %arg4[%c0_8, %c0_9] : memref<128x256xbf16, #tpu.memory_space<vmem>>, vector<128x256xbf16>
    %cst_10 = arith.constant dense<0.000000e+00> : vector<8x256xf32>
    %14 = tpu.matmul %3, %13, %cst_10 {dimension_numbers = #tpu.dot_dimension_numbers<[1], [0], [0], [1], [0, 0, 1, 1], [], []>} : vector<8x128xbf16>, vector<128x256xbf16>, vector<8x256xf32> -> vector<8x256xf32>
    %15 = tpu.concatenate %12, %12 in 1 : vector<8x128xf32>, vector<8x128xf32> -> vector<8x256xf32>
    %16 = vector.extract_strided_slice %5 {offsets = [0, 0], sizes = [8, 256], strides = [1, 1]} : vector<8x512xf32> to vector<8x256xf32>
    %17 = arith.mulf %16, %15 : vector<8x256xf32>
    %18 = arith.addf %17, %14 : vector<8x256xf32>
    %c0_11 = arith.constant 0 : index
    %c0_12 = arith.constant 0 : index
    %19 = vector.load %arg6[%c0_11, %c0_12] : memref<1x256xf32, #tpu.memory_space<vmem>>, vector<1x256xf32>
    %20 = vector.broadcast %19 : vector<1x256xf32> to vector<8x256xf32>
    %21 = arith.addf %18, %20 : vector<8x256xf32>
    %22 = arith.negf %21 : vector<8x256xf32>
    %23 = math.exp %22 : vector<8x256xf32>
    %cst_13 = arith.constant 1.000000e+00 : f32
    %24 = vector.broadcast %cst_13 : f32 to vector<8x256xf32>
    %25 = arith.addf %24, %23 : vector<8x256xf32>
    %26 = arith.divf %24, %25 : vector<8x256xf32>
    %27 = vector.extract_strided_slice %26 {offsets = [0, 0], sizes = [8, 128], strides = [1, 1]} : vector<8x256xf32> to vector<8x128xf32>
    %28 = vector.extract_strided_slice %26 {offsets = [0, 128], sizes = [8, 128], strides = [1, 1]} : vector<8x256xf32> to vector<8x128xf32>
    %29 = vector.extract_strided_slice %5 {offsets = [0, 256], sizes = [8, 128], strides = [1, 1]} : vector<8x512xf32> to vector<8x128xf32>
    %30 = arith.mulf %29, %12 : vector<8x128xf32>
    %31 = arith.mulf %28, %2 : vector<8x128xf32>
    %32 = arith.truncf %31 : vector<8x128xf32> to vector<8x128xbf16>
    %c0_14 = arith.constant 0 : index
    %c0_15 = arith.constant 0 : index
    %33 = vector.load %arg5[%c0_14, %c0_15] : memref<128x128xbf16, #tpu.memory_space<vmem>>, vector<128x128xbf16>
    %cst_16 = arith.constant dense<0.000000e+00> : vector<8x128xf32>
    %34 = tpu.matmul %32, %33, %cst_16 {dimension_numbers = #tpu.dot_dimension_numbers<[1], [0], [0], [1], [0, 0, 1, 1], [], []>} : vector<8x128xbf16>, vector<128x128xbf16>, vector<8x128xf32> -> vector<8x128xf32>
    %35 = arith.addf %30, %34 : vector<8x128xf32>
    %c0_17 = arith.constant 0 : index
    %c0_18 = arith.constant 0 : index
    %36 = vector.load %arg7[%c0_17, %c0_18] : memref<1x128xf32, #tpu.memory_space<vmem>>, vector<1x128xf32>
    %37 = vector.broadcast %36 : vector<1x128xf32> to vector<8x128xf32>
    %38 = arith.addf %35, %37 : vector<8x128xf32>
    %39 = math.tanh %38 : vector<8x128xf32>
    %40 = arith.mulf %27, %2 : vector<8x128xf32>
    %cst_19 = arith.constant 1.000000e+00 : f32
    %41 = vector.broadcast %cst_19 : f32 to vector<8x128xf32>
    %42 = arith.subf %41, %27 : vector<8x128xf32>
    %43 = arith.mulf %42, %39 : vector<8x128xf32>
    %44 = arith.addf %40, %43 : vector<8x128xf32>
    %c0_20 = arith.constant 0 : index
    %c0_21 = arith.constant 0 : index
    %45 = vector.load %arg9[%c0_20, %c0_21] : memref<8x128xf32, #tpu.memory_space<vmem>>, vector<8x128xf32>
    tpu.vector_store %arg9[%c0_20, %c0_21], %44 {strides = array<i32>} : memref<8x128xf32, #tpu.memory_space<vmem>>, vector<8x128xf32>,
    return
  }
  func.func @transform_0(%arg0: i32) -> (i32, i32) {
    %c0_i32 = arith.constant 0 : i32
    %c0_i32_0 = arith.constant 0 : i32
    return %arg0, %c0_i32 : i32, i32
  }
  func.func @transform_1(%arg0: i32) -> (i32, i32) {
    %c0_i32 = arith.constant 0 : i32
    %c0_i32_0 = arith.constant 0 : i32
    return %arg0, %c0_i32 : i32, i32
  }
  func.func @transform_2(%arg0: i32) -> (i32, i32) {
    %c0_i32 = arith.constant 0 : i32
    %c0_i32_0 = arith.constant 0 : i32
    %c0_i32_1 = arith.constant 0 : i32
    return %c0_i32, %c0_i32_0 : i32, i32
  }
  func.func @transform_3(%arg0: i32) -> (i32, i32) {
    %c0_i32 = arith.constant 0 : i32
    %c0_i32_0 = arith.constant 0 : i32
    %c0_i32_1 = arith.constant 0 : i32
    return %c0_i32, %c0_i32_0 : i32, i32
  }
  func.func @transform_4(%arg0: i32) -> (i32, i32) {
    %c0_i32 = arith.constant 0 : i32
    %c0_i32_0 = arith.constant 0 : i32
    %c0_i32_1 = arith.constant 0 : i32
    return %c0_i32, %c0_i32_0 : i32, i32
  }
  func.func @transform_5(%arg0: i32) -> (i32, i32) {
    %c0_i32 = arith.constant 0 : i32
    %c0_i32_0 = arith.constant 0 : i32
    %c0_i32_1 = arith.constant 0 : i32
    return %c0_i32, %c0_i32_0 : i32, i32
  }
  func.func @transform_6(%arg0: i32) -> (i32, i32) {
    %c0_i32 = arith.constant 0 : i32
    %c0_i32_0 = arith.constant 0 : i32
    %c0_i32_1 = arith.constant 0 : i32
    return %c0_i32, %c0_i32_0 : i32, i32
  }
  func.func @transform_7(%arg0: i32) -> (i32, i32) {
    %c0_i32 = arith.constant 0 : i32
    %c0_i32_0 = arith.constant 0 : i32
    %c0_i32_1 = arith.constant 0 : i32
    return %c0_i32, %c0_i32_0 : i32, i32
  }
  func.func @transform_8(%arg0: i32) -> (i32, i32) {
    %c0_i32 = arith.constant 0 : i32
    %c0_i32_0 = arith.constant 0 : i32
    return %arg0, %c0_i32 : i32, i32
  }
}

</mosaic_0001>

<llo_original>
// kernel: tpu_custom_call.1
$region0: #{tpu_custom_call.1}
  #allocation0 [shape = 'u32[]', space=smem, size = 0x4, offset = 0x4, fixed_abs, tag = 'smem constant byte address 0x4 - core index']
  #allocation1 [shape = 'u32[144,128]{1,0:T(1,128)}', space=vmem, size = 0x12000, scoped, tag = 'internal scratch']
  %s0 = inlined_call_operand.vmem [shape: f32[8,32], index: 0, kind: input, shape index: {}]
  %s1 = inlined_call_operand.hbm [shape: f32[8,128], index: 1, kind: input, shape index: {}, may-alias: {1,8}]
  %s2 = inlined_call_operand.hbm [shape: bf16[32,512], index: 2, kind: input, shape index: {}]
  %s3 = inlined_call_operand.hbm [shape: bf16[128,256], index: 3, kind: input, shape index: {}]
  %s4 = inlined_call_operand.hbm [shape: bf16[128,128], index: 4, kind: input, shape index: {}]
  %s5 = inlined_call_operand.vmem [shape: f32[1,256], index: 5, kind: input, shape index: {}]
  %s6 = inlined_call_operand.vmem [shape: f32[1,128], index: 6, kind: input, shape index: {}]
  %s7 = inlined_call_operand.vmem [shape: f32[1,128], index: 7, kind: input, shape index: {}]
  %s8 = inlined_call_operand.hbm [shape: f32[8,128], index: 8, kind: output, shape index: {}, may-alias: {1,8}]
  %s9 = sld [smem:[#allocation0]]
  $region58: #{tpu_custom_call.1} parent=0
    _
  %s11 = ssub.s32 1, %s9
  %s12 = scalar_select 0, %s11, %s9
  $region1: #{tpu_custom_call.1} parent=0
    #allocation2 [shape = 'u8[4096]{0}', space=vmem, size = 0x1000, scoped, tag = 'input window, operand 1, single buffered']
    #allocation3 [shape = 's32[1]{0}', space=sflag, size = 0x4, scoped, tag = 'scoped memory for tpu_custom_call.1']
    #allocation4 [shape = 's32[1]{0}', space=sflag, size = 0x4, scoped, tag = 'scoped memory for tpu_custom_call.1']
    #allocation5 [shape = 'u8[32768]{0}', space=vmem, size = 0x8000, scoped, tag = 'input window, operand 2, single buffered']
    #allocation6 [shape = 's32[1]{0}', space=sflag, size = 0x4, scoped, tag = 'scoped memory for tpu_custom_call.1']
    #allocation7 [shape = 'u8[65536]{0}', space=vmem, size = 0x10000, scoped, tag = 'input window, operand 3, single buffered']
    #allocation8 [shape = 'u8[32768]{0}', space=vmem, size = 0x8000, scoped, tag = 'input window, operand 4, single buffered']
    #allocation9 [shape = 's32[1]{0}', space=sflag, size = 0x4, scoped, tag = 'scoped memory for tpu_custom_call.1']
    #allocation10 [shape = 'u8[4096]{0}', space=vmem, size = 0x1000, scoped, tag = 'output window, operand 0, single buffered']
    %13 = vsyncpa [#allocation3], 0
    %14 = vsyncpa [#allocation6], 0
    %15 = vsyncpa [#allocation9], 0
    %16 = vsyncpa [#allocation4], 0
    // Predicated region
    $region2: #{tpu_custom_call.1} parent=1 // pred_check
      _
    $region3: #{tpu_custom_call.1} parent=1 // pred_check_branch
      %18 = sbr.rel (0) target = $region5
    $region4: #{tpu_custom_call.1} parent=1 // pred_region
      _
    $region5: #{tpu_custom_call.1} parent=1 // pred_fallthru
      _
    // Predicated region
    $region6: #{tpu_custom_call.1} parent=1 // pred_check
      _
    $region7: #{tpu_custom_call.1} parent=1 // pred_check_branch
      %20 = sbr.rel (0) target = $region9
    $region8: #{tpu_custom_call.1} parent=1 // pred_region
      %s22 = ssub.s32 128, 128
      %23 = vsyncadd [#allocation3], %s22
      %s25 = sshll.u32 [#allocation2], 4
      %s26 = int_to_ptr.vmem [resolvable:$true] %s25
      %28 = dma.hbm_to_vmem [thread:$0]  %s1, 128, %s26, [#allocation3]
    $region9: #{tpu_custom_call.1} parent=1 // pred_fallthru
      _
    // Predicated region
    $region10: #{tpu_custom_call.1} parent=1 // pred_check
      _
    $region11: #{tpu_custom_call.1} parent=1 // pred_check_branch
      %30 = sbr.rel (0) target = $region13
    $region12: #{tpu_custom_call.1} parent=1 // pred_region
      %s32 = ssub.s32 1024, 1024
      %33 = vsyncadd [#allocation6], %s32
      %s34 = sshll.u32 [#allocation5], 4
      %s35 = int_to_ptr.vmem [resolvable:$true] %s34
      %40 = dma.hbm_to_vmem [thread:$0]  %s2, 1024, %s35, [#allocation6], 256, 256, 16
    $region13: #{tpu_custom_call.1} parent=1 // pred_fallthru
      _
    // Predicated region
    $region14: #{tpu_custom_call.1} parent=1 // pred_check
      _
    $region15: #{tpu_custom_call.1} parent=1 // pred_check_branch
      %42 = sbr.rel (0) target = $region17
    $region16: #{tpu_custom_call.1} parent=1 // pred_region
      %s44 = ssub.s32 2048, 2048
      %45 = vsyncadd [#allocation6], %s44
      %s46 = sshll.u32 [#allocation7], 4
      %s47 = int_to_ptr.vmem [resolvable:$true] %s46
      %52 = dma.hbm_to_vmem [thread:$0]  %s3, 2048, %s47, [#allocation6], 128, 128, 8
    $region17: #{tpu_custom_call.1} parent=1 // pred_fallthru
      _
    // Predicated region
    $region18: #{tpu_custom_call.1} parent=1 // pred_check
      _
    $region19: #{tpu_custom_call.1} parent=1 // pred_check_branch
      %54 = sbr.rel (0) target = $region21
    $region20: #{tpu_custom_call.1} parent=1 // pred_region
      %s56 = ssub.s32 1024, 1024
      %57 = vsyncadd [#allocation9], %s56
      %s58 = sshll.u32 [#allocation8], 4
      %s59 = int_to_ptr.vmem [resolvable:$true] %s58
      %64 = dma.hbm_to_vmem [thread:$0]  %s4, 1024, %s59, [#allocation9], 64, 64, 4
    $region21: #{tpu_custom_call.1} parent=1 // pred_fallthru
      _
    // Predicated region
    $region22: #{tpu_custom_call.1} parent=1 // pred_check
      _
    $region23: #{tpu_custom_call.1} parent=1 // pred_check_branch
      %66 = sbr.rel (0) target = $region25
    $region24: #{tpu_custom_call.1} parent=1 // pred_region
      _
    $region25: #{tpu_custom_call.1} parent=1 // pred_fallthru
      _
    // Predicated region
    $region26: #{tpu_custom_call.1} parent=1 // pred_check
      _
    $region27: #{tpu_custom_call.1} parent=1 // pred_check_branch
      %68 = sbr.rel (0) target = $region29
    $region28: #{tpu_custom_call.1} parent=1 // pred_region
      _
    $region29: #{tpu_custom_call.1} parent=1 // pred_fallthru
      _
    // Predicated region
    $region30: #{tpu_custom_call.1} parent=1 // pred_check
      _
    $region31: #{tpu_custom_call.1} parent=1 // pred_check_branch
      %70 = sbr.rel (0) target = $region33
    $region32: #{tpu_custom_call.1} parent=1 // pred_region
      _
    $region33: #{tpu_custom_call.1} parent=1 // pred_fallthru
      _
    // Predicated region
    $region34: #{tpu_custom_call.1} parent=1 // pred_check
      _
    $region35: #{tpu_custom_call.1} parent=1 // pred_check_branch
      %72 = sbr.rel (0) target = $region37
    $region36: #{tpu_custom_call.1} parent=1 // pred_region
      %73 = dma.done [#allocation3], 128
    $region37: #{tpu_custom_call.1} parent=1 // pred_fallthru
      _
    // Predicated region
    $region38: #{tpu_custom_call.1} parent=1 // pred_check
      _
    $region39: #{tpu_custom_call.1} parent=1 // pred_check_branch
      %75 = sbr.rel (0) target = $region41
    $region40: #{tpu_custom_call.1} parent=1 // pred_region
      %76 = dma.done [#allocation6], 1024
    $region41: #{tpu_custom_call.1} parent=1 // pred_fallthru
      _
    // Predicated region
    $region42: #{tpu_custom_call.1} parent=1 // pred_check
      _
    $region43: #{tpu_custom_call.1} parent=1 // pred_check_branch
      %78 = sbr.rel (0) target = $region45
    $region44: #{tpu_custom_call.1} parent=1 // pred_region
      %79 = dma.done [#allocation6], 2048
    $region45: #{tpu_custom_call.1} parent=1 // pred_fallthru
      _
    // Predicated region
    $region46: #{tpu_custom_call.1} parent=1 // pred_check
      _
    $region47: #{tpu_custom_call.1} parent=1 // pred_check_branch
      %81 = sbr.rel (0) target = $region49
    $region48: #{tpu_custom_call.1} parent=1 // pred_region
      %82 = dma.done [#allocation9], 1024
    $region49: #{tpu_custom_call.1} parent=1 // pred_fallthru
      _
    %v84 = vld [vmem:[%s0] sm:$0xff]
    %v85 = vpack.c.bf16 %v84, %v84
    %v86 = vld [vmem:[#allocation2] sm:$0xff]
    %v87 = vpack.c.bf16 %v86, %v86
    %v88 = vld [vmem:[#allocation5] sm:$0xff]
    %v89 = vld [vmem:[#allocation5 + $0x8] sm:$0xff]
    %v90 = vld [vmem:[#allocation5 + $0x10] sm:$0xff]
    %v91 = vld [vmem:[#allocation5 + $0x18] sm:$0xff]
    %v92 = vld [vmem:[#allocation5 + $0x20] sm:$0xff]
    %v93 = vld [vmem:[#allocation5 + $0x28] sm:$0xff]
    %v94 = vld [vmem:[#allocation5 + $0x30] sm:$0xff]
    %v95 = vld [vmem:[#allocation5 + $0x38] sm:$0xff]
    %v104 = vunpack.c.l.b16 %v88
    %v105 = vunpack.c.h.b16 %v88
    %v106 = vunpack.c.l.b16 %v89
    %v107 = vunpack.c.h.b16 %v89
    %v108 = vunpack.c.l.b16 %v90
    %v109 = vunpack.c.h.b16 %v90
    %v110 = vunpack.c.l.b16 %v91
    %v111 = vunpack.c.h.b16 %v91
    %v112 = vunpack.c.l.b16 %v92
    %v113 = vunpack.c.h.b16 %v92
    %v114 = vunpack.c.l.b16 %v93
    %v115 = vunpack.c.h.b16 %v93
    %v116 = vunpack.c.l.b16 %v94
    %v117 = vunpack.c.h.b16 %v94
    %v118 = vunpack.c.l.b16 %v95
    %v119 = vunpack.c.h.b16 %v95
    %v120 = vpack.c.b16 %v108, %v104
    %v121 = vpack.c.b16 %v109, %v105
    %v122 = vpack.c.b16 %v110, %v106
    %v123 = vpack.c.b16 %v111, %v107
    %v124 = vpack.c.b16 %v116, %v112
    %v125 = vpack.c.b16 %v117, %v113
    %v126 = vpack.c.b16 %v118, %v114
    %v127 = vpack.c.b16 %v119, %v115
    %vm136 = vcmask 261120
    %v138 = vsel %vm136, %v85, 0
    %140 = vmatprep.subr.bf16.mxu0 %v121
    %141 = vmatpush1.bf16.msra.mxu0 %v120
    %142 = vmatprep.subr.bf16.mxu0 %v125
    %143 = vmatpush1.bf16.msra.mxu0 %v124
    %144 = vmatprep.subr.bf16.mxu0 0
    %145 = vmatpush1.bf16.msra.mxu0 0
    %146 = vmatprep.subr.bf16.mxu0 0
    %147 = vmatpush1.bf16.msra.mxu0 0
    %148 = vmatprep.subr.bf16.mxu0 0
    %149 = vmatpush1.bf16.msra.mxu0 0
    %150 = vmatprep.subr.bf16.mxu0 0
    %151 = vmatpush1.bf16.msra.mxu0 0
    %152 = vmatprep.subr.bf16.mxu0 0
    %153 = vmatpush1.bf16.msra.mxu0 0
    %154 = vmatprep.subr.bf16.mxu0 0
    %155 = vmatpush1.bf16.msra.mxu0 0
    %156 = vmatprep.subr.bf16.mxu0 0
    %157 = vmatpush1.bf16.msra.mxu0 0
    %158 = vmatprep.subr.bf16.mxu0 0
    %159 = vmatpush1.bf16.msra.mxu0 0
    %160 = vmatprep.subr.bf16.mxu0 0
    %161 = vmatpush1.bf16.msra.mxu0 0
    %162 = vmatprep.subr.bf16.mxu0 0
    %163 = vmatpush1.bf16.msra.mxu0 0
    %164 = vmatprep.subr.bf16.mxu0 0
    %165 = vmatpush1.bf16.msra.mxu0 0
    %166 = vmatprep.subr.bf16.mxu0 0
    %167 = vmatpush1.bf16.msra.mxu0 0
    %168 = vmatprep.subr.bf16.mxu0 0
    %169 = vmatpush1.bf16.msra.mxu0 0
    %170 = vmatprep.subr.bf16.mxu0 0
    %171 = vmatpush1.bf16.msra.mxu0 0
    %172 = vmatprep.mubr.bf16.mxu0 0
    %173 = vmatmul.mubr.bf16.gmra.mrb[0].mxu0 %v138
    %v174 = vpop.f32.mrb[0].mxu0
    %v175 = vadd.f32 0.0, %v174
    %v176 = vpop.f32.mrb[0].mxu0
    %v177 = vadd.f32 0.0, %v176
    %v178 = vpop.f32.mrb[0].mxu0
    %v179 = vpop.f32.mrb[0].mxu0
    %180 = vdwg.mxu0
    %181 = vmatprep.subr.bf16.mxu0 %v123
    %182 = vmatpush1.bf16.msra.mxu0 %v122
    %183 = vmatprep.subr.bf16.mxu0 %v127
    %184 = vmatpush1.bf16.msra.mxu0 %v126
    %185 = vmatprep.subr.bf16.mxu0 0
    %186 = vmatpush1.bf16.msra.mxu0 0
    %187 = vmatprep.subr.bf16.mxu0 0
    %188 = vmatpush1.bf16.msra.mxu0 0
    %189 = vmatprep.subr.bf16.mxu0 0
    %190 = vmatpush1.bf16.msra.mxu0 0
    %191 = vmatprep.subr.bf16.mxu0 0
    %192 = vmatpush1.bf16.msra.mxu0 0
    %193 = vmatprep.subr.bf16.mxu0 0
    %194 = vmatpush1.bf16.msra.mxu0 0
    %195 = vmatprep.subr.bf16.mxu0 0
    %196 = vmatpush1.bf16.msra.mxu0 0
    %197 = vmatprep.subr.bf16.mxu0 0
    %198 = vmatpush1.bf16.msra.mxu0 0
    %199 = vmatprep.subr.bf16.mxu0 0
    %200 = vmatpush1.bf16.msra.mxu0 0
    %201 = vmatprep.subr.bf16.mxu0 0
    %202 = vmatpush1.bf16.msra.mxu0 0
    %203 = vmatprep.subr.bf16.mxu0 0
    %204 = vmatpush1.bf16.msra.mxu0 0
    %205 = vmatprep.subr.bf16.mxu0 0
    %206 = vmatpush1.bf16.msra.mxu0 0
    %207 = vmatprep.subr.bf16.mxu0 0
    %208 = vmatpush1.bf16.msra.mxu0 0
    %209 = vmatprep.subr.bf16.mxu0 0
    %210 = vmatpush1.bf16.msra.mxu0 0
    %211 = vmatprep.subr.bf16.mxu0 0
    %212 = vmatpush1.bf16.msra.mxu0 0
    %213 = vmatprep.mubr.bf16.mxu0 0
    %214 = vmatmul.mubr.bf16.gmra.mrb[0].mxu0 %v138
    %v215 = vpop.f32.mrb[0].mxu0
    %v216 = vadd.f32 0.0, %v215
    %v217 = vpop.f32.mrb[0].mxu0
    %v218 = vadd.f32 0.0, %v217
    %v219 = vpop.f32.mrb[0].mxu0
    %v220 = vpop.f32.mrb[0].mxu0
    %221 = vdwg.mxu0
    %v222 = vld [vmem:[%s7] sm:$0x1]
    %v224 = vlaneseq
    %v225 = vshrl.u32 %v224, 7
    %v226 = vsub.s32 0, %v225
    %v227 = vrot.slane %v222, %v226
    %v229 = vadd.f32 %v218, %v227
    %v230 = vmin.f32 %v229, 0.0
    %v231 = vmul.f32 %v230, 1.442695
    %v232 = vpow.pop %v231
    %v233 = vld [vmem:[#allocation7] sm:$0xff]
    %v234 = vld [vmem:[#allocation7 + $0x8] sm:$0xff]
    %v235 = vld [vmem:[#allocation7 + $0x10] sm:$0xff]
    %v236 = vld [vmem:[#allocation7 + $0x18] sm:$0xff]
    %v237 = vld [vmem:[#allocation7 + $0x20] sm:$0xff]
    %v238 = vld [vmem:[#allocation7 + $0x28] sm:$0xff]
    %v239 = vld [vmem:[#allocation7 + $0x30] sm:$0xff]
    %v240 = vld [vmem:[#allocation7 + $0x38] sm:$0xff]
    %v241 = vld [vmem:[#allocation7 + $0x40] sm:$0xff]
    %v242 = vld [vmem:[#allocation7 + $0x48] sm:$0xff]
    %v243 = vld [vmem:[#allocation7 + $0x50] sm:$0xff]
    %v244 = vld [vmem:[#allocation7 + $0x58] sm:$0xff]
    %v245 = vld [vmem:[#allocation7 + $0x60] sm:$0xff]
    %v246 = vld [vmem:[#allocation7 + $0x68] sm:$0xff]
    %v247 = vld [vmem:[#allocation7 + $0x70] sm:$0xff]
    %v248 = vld [vmem:[#allocation7 + $0x78] sm:$0xff]
    %v265 = vunpack.c.l.b16 %v233
    %v266 = vunpack.c.h.b16 %v233
    %v267 = vunpack.c.l.b16 %v234
    %v268 = vunpack.c.h.b16 %v234
    %v269 = vunpack.c.l.b16 %v235
    %v270 = vunpack.c.h.b16 %v235
    %v271 = vunpack.c.l.b16 %v236
    %v272 = vunpack.c.h.b16 %v236
    %v273 = vunpack.c.l.b16 %v237
    %v274 = vunpack.c.h.b16 %v237
    %v275 = vunpack.c.l.b16 %v238
    %v276 = vunpack.c.h.b16 %v238
    %v277 = vunpack.c.l.b16 %v239
    %v278 = vunpack.c.h.b16 %v239
    %v279 = vunpack.c.l.b16 %v240
    %v280 = vunpack.c.h.b16 %v240
    %v281 = vunpack.c.l.b16 %v241
    %v282 = vunpack.c.h.b16 %v241
    %v283 = vunpack.c.l.b16 %v242
    %v284 = vunpack.c.h.b16 %v242
    %v285 = vunpack.c.l.b16 %v243
    %v286 = vunpack.c.h.b16 %v243
    %v287 = vunpack.c.l.b16 %v244
    %v288 = vunpack.c.h.b16 %v244
    %v289 = vunpack.c.l.b16 %v245
    %v290 = vunpack.c.h.b16 %v245
    %v291 = vunpack.c.l.b16 %v246
    %v292 = vunpack.c.h.b16 %v246
    %v293 = vunpack.c.l.b16 %v247
    %v294 = vunpack.c.h.b16 %v247
    %v295 = vunpack.c.l.b16 %v248
    %v296 = vunpack.c.h.b16 %v248
    %v297 = vpack.c.b16 %v267, %v265
    %v298 = vpack.c.b16 %v268, %v266
    %v299 = vpack.c.b16 %v271, %v269
    %v300 = vpack.c.b16 %v272, %v270
    %v301 = vpack.c.b16 %v275, %v273
    %v302 = vpack.c.b16 %v276, %v274
    %v303 = vpack.c.b16 %v279, %v277
    %v304 = vpack.c.b16 %v280, %v278
    %v305 = vpack.c.b16 %v283, %v281
    %v306 = vpack.c.b16 %v284, %v282
    %v307 = vpack.c.b16 %v287, %v285
    %v308 = vpack.c.b16 %v288, %v286
    %v309 = vpack.c.b16 %v291, %v289
    %v310 = vpack.c.b16 %v292, %v290
    %v311 = vpack.c.b16 %v295, %v293
    %v312 = vpack.c.b16 %v296, %v294
    %329 = vmatprep.subr.bf16.mxu0 %v298
    %330 = vmatpush1.bf16.msra.mxu0 %v297
    %331 = vmatprep.subr.bf16.mxu0 %v300
    %332 = vmatpush1.bf16.msra.mxu0 %v299
    %333 = vmatprep.subr.bf16.mxu0 %v302
    %334 = vmatpush1.bf16.msra.mxu0 %v301
    %335 = vmatprep.subr.bf16.mxu0 %v304
    %336 = vmatpush1.bf16.msra.mxu0 %v303
    %337 = vmatprep.subr.bf16.mxu0 %v306
    %338 = vmatpush1.bf16.msra.mxu0 %v305
    %339 = vmatprep.subr.bf16.mxu0 %v308
    %340 = vmatpush1.bf16.msra.mxu0 %v307
    %341 = vmatprep.subr.bf16.mxu0 %v310
    %342 = vmatpush1.bf16.msra.mxu0 %v309
    %343 = vmatprep.subr.bf16.mxu0 %v312
    %344 = vmatpush1.bf16.msra.mxu0 %v311
    %345 = vmatprep.subr.bf16.mxu0 0
    %346 = vmatpush1.bf16.msra.mxu0 0
    %347 = vmatprep.subr.bf16.mxu0 0
    %348 = vmatpush1.bf16.msra.mxu0 0
    %349 = vmatprep.subr.bf16.mxu0 0
    %350 = vmatpush1.bf16.msra.mxu0 0
    %351 = vmatprep.subr.bf16.mxu0 0
    %352 = vmatpush1.bf16.msra.mxu0 0
    %353 = vmatprep.subr.bf16.mxu0 0
    %354 = vmatpush1.bf16.msra.mxu0 0
    %355 = vmatprep.subr.bf16.mxu0 0
    %356 = vmatpush1.bf16.msra.mxu0 0
    %357 = vmatprep.subr.bf16.mxu0 0
    %358 = vmatpush1.bf16.msra.mxu0 0
    %359 = vmatprep.subr.bf16.mxu0 0
    %360 = vmatpush1.bf16.msra.mxu0 0
    %361 = vmatprep.mubr.bf16.mxu0 0
    %362 = vmatmul.mubr.bf16.gmra.mrb[0].mxu0 %v87
    %v363 = vpop.f32.mrb[0].mxu0
    %v364 = vadd.f32 0.0, %v363
    %v365 = vpop.f32.mrb[0].mxu0
    %v366 = vadd.f32 0.0, %v365
    %v367 = vpop.f32.mrb[0].mxu0
    %v368 = vpop.f32.mrb[0].mxu0
    %369 = vdwg.mxu0
    %v370 = vmul.f32 %v175, %v232
    %v371 = vmul.f32 %v177, %v232
    %v372 = vadd.f32 %v370, %v364
    %v373 = vadd.f32 %v371, %v366
    %v374 = vld [vmem:[%s5] sm:$0x3]
    %v376 = vlaneseq
    %v377 = vshrl.u32 %v376, 7
    %v378 = vsub.s32 0, %v377
    %v379 = vrot.slane %v374, %v378
    %v380 = vlaneseq
    %v381 = vshrl.u32 %v380, 7
    %v382 = vsub.s32 1, %v381
    %v383 = vrot.slane %v374, %v382
    %v386 = vadd.f32 %v372, %v379
    %v387 = vadd.f32 %v373, %v383
    %v388 = vxor.u32 %v386, 2147483648
    %v389 = vxor.u32 %v387, 2147483648
    %v390 = vmul.f32 %v388, 1.442695
    %v391 = vpow.pop %v390
    %v392 = vmul.f32 %v389, 1.442695
    %v393 = vpow.pop %v392
    %v394 = vadd.f32 %v391, 1.0
    %v395 = vadd.f32 %v393, 1.0
    %v396 = vrcp.pop %v394
    %v397 = vmul.f32 1.0, %v396
    %v398 = vrcp.pop %v395
    %v399 = vmul.f32 1.0, %v398
    %v400 = vmul.f32 %v216, %v232
    %v401 = vmul.f32 %v399, %v86
    %v402 = vpack.c.bf16 %v401, %v401
    %v403 = vld [vmem:[#allocation8] sm:$0xf]
    %v404 = vld [vmem:[#allocation8 + $0x4] sm:$0xf]
    %v405 = vld [vmem:[#allocation8 + $0x8] sm:$0xf]
    %v406 = vld [vmem:[#allocation8 + $0xc] sm:$0xf]
    %v407 = vld [vmem:[#allocation8 + $0x10] sm:$0xf]
    %v408 = vld [vmem:[#allocation8 + $0x14] sm:$0xf]
    %v409 = vld [vmem:[#allocation8 + $0x18] sm:$0xf]
    %v410 = vld [vmem:[#allocation8 + $0x1c] sm:$0xf]
    %v411 = vld [vmem:[#allocation8 + $0x20] sm:$0xf]
    %v412 = vld [vmem:[#allocation8 + $0x24] sm:$0xf]
    %v413 = vld [vmem:[#allocation8 + $0x28] sm:$0xf]
    %v414 = vld [vmem:[#allocation8 + $0x2c] sm:$0xf]
    %v415 = vld [vmem:[#allocation8 + $0x30] sm:$0xf]
    %v416 = vld [vmem:[#allocation8 + $0x34] sm:$0xf]
    %v417 = vld [vmem:[#allocation8 + $0x38] sm:$0xf]
    %v418 = vld [vmem:[#allocation8 + $0x3c] sm:$0xf]
    %v435 = vunpack.c.l.b16 %v403
    %v436 = vunpack.c.l.b16 %v404
    %v437 = vunpack.c.l.b16 %v405
    %v438 = vunpack.c.l.b16 %v406
    %v439 = vunpack.c.l.b16 %v407
    %v440 = vunpack.c.l.b16 %v408
    %v441 = vunpack.c.l.b16 %v409
    %v442 = vunpack.c.l.b16 %v410
    %v443 = vunpack.c.l.b16 %v411
    %v444 = vunpack.c.l.b16 %v412
    %v445 = vunpack.c.l.b16 %v413
    %v446 = vunpack.c.l.b16 %v414
    %v447 = vunpack.c.l.b16 %v415
    %v448 = vunpack.c.l.b16 %v416
    %v449 = vunpack.c.l.b16 %v417
    %v450 = vunpack.c.l.b16 %v418
    %v451 = vpack.c.b16 %v436, %v435
    %v452 = vpack.c.b16 %v438, %v437
    %v453 = vpack.c.b16 %v440, %v439
    %v454 = vpack.c.b16 %v442, %v441
    %v455 = vpack.c.b16 %v444, %v443
    %v456 = vpack.c.b16 %v446, %v445
    %v457 = vpack.c.b16 %v448, %v447
    %v458 = vpack.c.b16 %v450, %v449
    %467 = vmatprep.subr.bf16.mxu0 0
    %468 = vmatpush1.bf16.msra.mxu0 %v451
    %469 = vmatprep.subr.bf16.mxu0 0
    %470 = vmatpush1.bf16.msra.mxu0 %v452
    %471 = vmatprep.subr.bf16.mxu0 0
    %472 = vmatpush1.bf16.msra.mxu0 %v453
    %473 = vmatprep.subr.bf16.mxu0 0
    %474 = vmatpush1.bf16.msra.mxu0 %v454
    %475 = vmatprep.subr.bf16.mxu0 0
    %476 = vmatpush1.bf16.msra.mxu0 %v455
    %477 = vmatprep.subr.bf16.mxu0 0
    %478 = vmatpush1.bf16.msra.mxu0 %v456
    %479 = vmatprep.subr.bf16.mxu0 0
    %480 = vmatpush1.bf16.msra.mxu0 %v457
    %481 = vmatprep.subr.bf16.mxu0 0
    %482 = vmatpush1.bf16.msra.mxu0 %v458
    %483 = vmatprep.subr.bf16.mxu0 0
    %484 = vmatpush1.bf16.msra.mxu0 0
    %485 = vmatprep.subr.bf16.mxu0 0
    %486 = vmatpush1.bf16.msra.mxu0 0
    %487 = vmatprep.subr.bf16.mxu0 0
    %488 = vmatpush1.bf16.msra.mxu0 0
    %489 = vmatprep.subr.bf16.mxu0 0
    %490 = vmatpush1.bf16.msra.mxu0 0
    %491 = vmatprep.subr.bf16.mxu0 0
    %492 = vmatpush1.bf16.msra.mxu0 0
    %493 = vmatprep.subr.bf16.mxu0 0
    %494 = vmatpush1.bf16.msra.mxu0 0
    %495 = vmatprep.subr.bf16.mxu0 0
    %496 = vmatpush1.bf16.msra.mxu0 0
    %497 = vmatprep.subr.bf16.mxu0 0
    %498 = vmatpush1.bf16.msra.mxu0 0
    %499 = vmatprep.mubr.bf16.mxu0 0
    %500 = vmatmul.mubr.bf16.gmra.mrb[0].mxu0 %v402
    %v501 = vpop.f32.mrb[0].mxu0
    %v502 = vadd.f32 0.0, %v501
    %v503 = vpop.f32.mrb[0].mxu0
    %v504 = vpop.f32.mrb[0].mxu0
    %v505 = vpop.f32.mrb[0].mxu0
    %506 = vdwg.mxu0
    %v507 = vadd.f32 %v400, %v502
    %v508 = vld [vmem:[%s6] sm:$0x1]
    %v510 = vlaneseq
    %v511 = vshrl.u32 %v510, 7
    %v512 = vsub.s32 0, %v511
    %v513 = vrot.slane %v508, %v512
    %v515 = vadd.f32 %v507, %v513
    %v516 = vtanh.pop %v515
    %v517 = vmul.f32 %v397, %v86
    %v518 = vsub.f32 1.0, %v397
    %v519 = vmul.f32 %v518, %v516
    %v520 = vadd.f32 %v517, %v519
    %521 = vst [vmem:[#allocation10] sm:$0xff] %v520
    // Predicated region
    $region50: #{tpu_custom_call.1} parent=1 // pred_check
      _
    $region51: #{tpu_custom_call.1} parent=1 // pred_check_branch
      %523 = sbr.rel (0) target = $region53
    $region52: #{tpu_custom_call.1} parent=1 // pred_region
      %s525 = ssub.s32 128, 128
      %526 = vsyncadd [#allocation4], %s525
      %s528 = sshll.u32 [#allocation10], 4
      %s529 = int_to_ptr.vmem [resolvable:$true] %s528
      %531 = dma.vmem_to_hbm [thread:$0]  %s529, 128, %s8, [#allocation4]
    $region53: #{tpu_custom_call.1} parent=1 // pred_fallthru
      _
    // Predicated region
    $region54: #{tpu_custom_call.1} parent=1 // pred_check
      _
    $region55: #{tpu_custom_call.1} parent=1 // pred_check_branch
      %533 = sbr.rel (0) target = $region57
    $region56: #{tpu_custom_call.1} parent=1 // pred_region
      %534 = dma.done [#allocation4], 128
    $region57: #{tpu_custom_call.1} parent=1 // pred_fallthru
      _
    %535 = vsyncpa [#allocation3], 1
    %536 = vsyncpa [#allocation6], 1
    %537 = vsyncpa [#allocation9], 1
    %538 = vsyncpa [#allocation4], 1

</llo_original>
